<compile_context>
chip_gen: v7x
topology: tpu7x:2x2x1
jax: 0.10.0
libtpu: 0.0.40
codegen_flags: <defaults>
</compile_context>

<pallas_src>
import jax
import jax.numpy as jnp
from jax import lax
from jax.experimental import pallas as pl
from jax.experimental.pallas import tpu as pltpu


# ---------------------------------------------------------------------------
# Kernel
# ---------------------------------------------------------------------------
def _mlp_kernel(x_ref, w1_ref, b1_ref, w2_ref, b2_ref, w3_ref, b3_ref, o_ref):
    # x arrives in native f32 (no extra wrapper pass over HBM); cast to bf16 here —
    # VPU work that hides under the x DMA / MXU.
    x_bf = x_ref[...].astype(jnp.bfloat16)                        # (tb, in)

    # Layer 1: W1 @ x^T as an rhs-transposed MXU matmul (contract both last dims),
    # bf16 operands, f32 accumulation.  Output (hid, tb): batch on the lane axis.
    s1 = lax.dot_general(w1_ref[...], x_bf, (((1,), (1,)), ((), ())),
                         preferred_element_type=jnp.float32)      # (hid, tb)
    h1 = jnp.tanh(s1 + b1_ref[...])                               # f32, lane-broadcast bias

    # Layer 2: W2 @ h1 (standard MXU matmul), bf16 operands, f32 accumulation.
    s2 = jnp.dot(w2_ref[...], h1.astype(jnp.bfloat16),
                 preferred_element_type=jnp.float32)              # (hid, tb)
    h2 = jnp.tanh(s2 + b2_ref[...])

    # Layer 3 (out_features == 1): lane-broadcast multiply + sublane reduction
    # (VPU + XLU) — the result is already the lane-dense (1, tb) output row.
    z = jnp.sum(h2 * w3_ref[...], axis=0, keepdims=True) + b3_ref[...]   # (1, tb)

    # Softplus with PyTorch semantics (beta=1, threshold=20), overflow-safe.
    o_ref[...] = jnp.where(z > 20.0, z, jnp.log1p(jnp.exp(jnp.minimum(z, 20.0))))


# ---------------------------------------------------------------------------
# Tiling / VMEM policy
# ---------------------------------------------------------------------------
def _round_up(x, m):
    return ((x + m - 1) // m) * m


def _vmem_budget():
    """Generation-aware (scoped_vmem_limit, per-x-buffer cap) in bytes."""
    try:
        info = pltpu.get_tpu_info()
        phys = getattr(info, "vmem_capacity_bytes", None) or 64 * 1024 * 1024
    except Exception:
        phys = 64 * 1024 * 1024                      # assume the tightest part (v7x)
    if phys >= 128 * 1024 * 1024:                    # v5e / v6e: 128 MiB physical
        return 64 * 1024 * 1024, 16 * 1024 * 1024
    return 36 * 1024 * 1024, 6 * 1024 * 1024         # v7x: 64 MiB physical


def _choose_batch_tile(batch, in_size, per_buf_bytes):
    """Batch-tile policy:
       * <32 rows: one small step (perf irrelevant).
       * 32..256 rows: >=2 grid steps so v7x's second TensorCore gets work.
       * larger: 256-512 rows/step, >=4 steps when the batch allows; tiles rounded
         to 128 (lane-dense (1, tb) output rows) when the tile is large enough,
         else to 16 (bf16 sublane pair) to bound padding waste.
       The cap keeps one double-buffered (tb, in) f32 x tile inside its VMEM budget."""
    cap = max(16, ((per_buf_bytes // max(4 * in_size, 1)) // 16) * 16)
    if batch < 32:
        tb = _round_up(batch, 16)
    elif batch <= 256:
        tb = _round_up(pl.cdiv(batch, 2), 16)
    else:
        n_steps = max(4, pl.cdiv(batch, 512))
        tb = pl.cdiv(batch, n_steps)
        tb = _round_up(tb, 128) if tb >= 128 else _round_up(tb, 16)
    return max(16, min(tb, cap))


# ---------------------------------------------------------------------------
# Wrapper
# ---------------------------------------------------------------------------
def four_layer_nn(x, params, *, batch_tile=None, x_buffers=None):
    """Fused forward pass.  x: (B, input_size) float.  Returns (B, 1) float32.

    params are torch-layout: (w1 (hid,in), b1 (hid,), w2 (hid,hid), b2 (hid,),
    w3 (1,hid), b3 (1,)).  `x_buffers=3` enables a 3-deep x pipeline (useful on v5e
    when the x stream is exposed); default keeps the standard double buffer."""
    w1, b1, w2, b2, w3, b3 = params
    B, in_sz = x.shape
    hid = w1.shape[0]

    vmem_limit, per_buf = _vmem_budget()
    tb = batch_tile if batch_tile is not None else _choose_batch_tile(B, in_sz, per_buf)
    tb = max(16, _round_up(tb, 16))
    num_tiles = pl.cdiv(B, tb)
    Bp = num_tiles * tb

    x_f32 = x.astype(jnp.float32)
    if Bp != B:
        # Ragged tail only: zero-pad.  tanh/softplus of the bias are finite, so the
        # padded rows cannot produce NaN/Inf; they are sliced off below.
        x_f32 = jnp.pad(x_f32, ((0, Bp - B), (0, 0)))

    # Resident operands (grid-constant block index -> DMA'd once, stay in VMEM).
    # TODO(synk): if hidden_size ever grows past ~2k, add a K-tiled grid axis for the
    # layer-2 matmul instead of keeping w2 fully resident (v7x has only 64 MiB VMEM).
    w1_bf = w1.astype(jnp.bfloat16)                       # (hid, in)
    w2_bf = w2.astype(jnp.bfloat16)                       # (hid, hid)
    b1_c = b1.reshape(hid, 1).astype(jnp.float32)
    b2_c = b2.reshape(hid, 1).astype(jnp.float32)
    w3_c = w3.reshape(hid, 1).astype(jnp.float32)         # (1, hid) -> (hid, 1) column
    b3_c = b3.reshape(1, 1).astype(jnp.float32)

    if x_buffers is None:
        x_spec = pl.BlockSpec((tb, in_sz), lambda i: (i, 0))
    else:
        # Deeper x pipeline for v5e-class HBM when the x stream is exposed.
        x_spec = pl.BlockSpec((tb, in_sz), lambda i: (i, 0),
                              pipeline_mode=pl.Buffered(x_buffers))

    out = pl.pallas_call(
        _mlp_kernel,
        out_shape=jax.ShapeDtypeStruct((num_tiles, tb), jnp.float32),
        grid_spec=pltpu.PrefetchScalarGridSpec(
            num_scalar_prefetch=0,
            grid=(num_tiles,),
            in_specs=[
                x_spec,                                           # x     (f32)
                pl.BlockSpec((hid, in_sz), lambda i: (0, 0)),     # w1    (bf16)
                pl.BlockSpec((hid, 1), lambda i: (0, 0)),         # b1    (f32)
                pl.BlockSpec((hid, hid), lambda i: (0, 0)),       # w2    (bf16)
                pl.BlockSpec((hid, 1), lambda i: (0, 0)),         # b2    (f32)
                pl.BlockSpec((hid, 1), lambda i: (0, 0)),         # w3    (f32)
                pl.BlockSpec((1, 1), lambda i: (0, 0)),           # b3    (f32)
            ],
            # Lane-dense output: one (1, tb) row per grid step.
            out_specs=pl.BlockSpec((1, tb), lambda i: (i, 0)),
        ),
        compiler_params=pltpu.CompilerParams(
            dimension_semantics=("parallel",),
            vmem_limit_bytes=vmem_limit,
        ),
    )(x_f32, w1_bf, b1_c, w2_bf, b2_c, w3_c, b3_c)

    return out.reshape(Bp, 1)[:B]


# ---------------------------------------------------------------------------
# Init + references
# ---------------------------------------------------------------------------
def init_params(key, input_size, hidden_size):
    """torch.nn.Linear-style init (uniform +/- 1/sqrt(fan_in)), torch layout."""
    ks = jax.random.split(key, 6)

    def lin(kw, kb, fan_in, fan_out):
        bound = 1.0 / jnp.sqrt(fan_in)
        w = jax.random.uniform(kw, (fan_out, fan_in), jnp.float32, -bound, bound)
        b = jax.random.uniform(kb, (fan_out,), jnp.float32, -bound, bound)
        return w, b

    w1, b1 = lin(ks[0], ks[1], input_size, hidden_size)
    w2, b2 = lin(ks[2], ks[3], hidden_size, hidden_size)
    w3, b3 = lin(ks[4], ks[5], hidden_size, 1)
    return (w1, b1, w2, b2, w3, b3)


def _softplus(z):
    return jnp.where(z > 20.0, z, jnp.log1p(jnp.exp(jnp.minimum(z, 20.0))))


def reference_forward_f32(x, params):
    """Pure-f32 reference: exact PyTorch-module semantics (looser tolerance vs kernel)."""
    w1, b1, w2, b2, w3, b3 = params
    h1 = jnp.tanh(x @ w1.T + b1)
    h2 = jnp.tanh(h1 @ w2.T + b2)
    return _softplus(h2 @ w3.T + b3)


def reference_forward_bf16(x, params):
    """Mirrors the kernel's numerics: bf16 matmul operands, f32 accumulate/activations."""
    w1, b1, w2, b2, w3, b3 = params
    f = lambda a: a.astype(jnp.bfloat16).astype(jnp.float32)
    h1 = jnp.tanh(f(x) @ f(w1).T + b1)
    h2 = jnp.tanh(f(h1) @ f(w2).T + b2)
    return _softplus(h2 @ w3.T + b3)


# ---------------------------------------------------------------------------
# Smoke test
# ---------------------------------------------------------------------------
if __name__ == "__main__":
    key = jax.random.PRNGKey(0)
    kx, kp, kx2, kx3 = jax.random.split(key, 4)

    batch, input_size, hidden_size = 8, 32, 32
    x = jax.random.normal(kx, (batch, input_size), jnp.float32)
    params = init_params(kp, input_size, hidden_size)

    # Single-tile path.
    out = jax.block_until_ready(four_layer_nn(x, params))
    assert out.shape == (batch, 1)
    assert jnp.allclose(out, reference_forward_bf16(x, params), atol=2e-3, rtol=2e-3)
    assert jnp.allclose(out, reference_forward_f32(x, params), atol=3e-2, rtol=3e-2)

    # Multi-tile + ragged-batch path (batch padded 20 -> 32, two 16-row grid steps).
    x2 = jax.random.normal(kx2, (20, input_size), jnp.float32)
    out2 = jax.block_until_ready(four_layer_nn(x2, params, batch_tile=16))
    assert out2.shape == (20, 1)
    assert jnp.allclose(out2, reference_forward_bf16(x2, params), atol=2e-3, rtol=2e-3)

    # Default tiling policy on a larger batch (exercises the 128-rounded multi-step branch).
    x3 = jax.random.normal(kx3, (600, input_size), jnp.float32)
    out3 = jax.block_until_ready(four_layer_nn(x3, params))
    assert out3.shape == (600, 1)
    assert jnp.allclose(out3, reference_forward_bf16(x3, params), atol=2e-3, rtol=2e-3)

    print("KERNEL_OK")
</pallas_src>

<mosaic_0001>
module attributes {stable_mosaic.version = 11 : i64} {
  func.func @_mlp_kernel(%arg0: i32, %arg1: memref<16x32xf32, #tpu.memory_space<vmem>>, %arg2: memref<32x32xbf16, #tpu.memory_space<vmem>>, %arg3: memref<32x1xf32, #tpu.memory_space<vmem>>, %arg4: memref<32x32xbf16, #tpu.memory_space<vmem>>, %arg5: memref<32x1xf32, #tpu.memory_space<vmem>>, %arg6: memref<32x1xf32, #tpu.memory_space<vmem>>, %arg7: memref<1x1xf32, #tpu.memory_space<vmem>>, %arg8: memref<1x16xf32, #tpu.memory_space<vmem>>) attributes {dimension_semantics = [#tpu.dimension_semantics<parallel>], iteration_bounds = array<i64: 1>, scalar_prefetch = 0 : i64, scratch_operands = 0 : i64, tpu.core_type = #tpu.core_type<tc>, window_params = [{transform_indices = @transform_0, window_bounds = array<i64: 16, 32>}, {pipeline_mode = #tpu.pipeline_mode<synchronous>, transform_indices = @transform_1, window_bounds = array<i64: 32, 32>}, {pipeline_mode = #tpu.pipeline_mode<synchronous>, transform_indices = @transform_2, window_bounds = array<i64: 32, 1>}, {pipeline_mode = #tpu.pipeline_mode<synchronous>, transform_indices = @transform_3, window_bounds = array<i64: 32, 32>}, {pipeline_mode = #tpu.pipeline_mode<synchronous>, transform_indices = @transform_4, window_bounds = array<i64: 32, 1>}, {pipeline_mode = #tpu.pipeline_mode<synchronous>, transform_indices = @transform_5, window_bounds = array<i64: 32, 1>}, {pipeline_mode = #tpu.pipeline_mode<synchronous>, transform_indices = @transform_6, window_bounds = array<i64: 1, 1>}, {transform_indices = @transform_7, window_bounds = array<i64: 1, 16>}]} {
    %c0 = arith.constant 0 : index
    %c0_0 = arith.constant 0 : index
    %0 = vector.load %arg1[%c0, %c0_0] : memref<16x32xf32, #tpu.memory_space<vmem>>, vector<16x32xf32>
    %1 = arith.truncf %0 : vector<16x32xf32> to vector<16x32xbf16>
    %c0_1 = arith.constant 0 : index
    %c0_2 = arith.constant 0 : index
    %2 = vector.load %arg2[%c0_1, %c0_2] : memref<32x32xbf16, #tpu.memory_space<vmem>>, vector<32x32xbf16>
    %cst = arith.constant dense<0.000000e+00> : vector<32x16xf32>
    %3 = tpu.matmul %2, %1, %cst {dimension_numbers = #tpu.dot_dimension_numbers<[1], [1], [0], [0], [0, 0, 1, 0], [], []>} : vector<32x32xbf16>, vector<16x32xbf16>, vector<32x16xf32> -> vector<32x16xf32>
    %c0_3 = arith.constant 0 : index
    %c0_4 = arith.constant 0 : index
    %4 = vector.load %arg3[%c0_3, %c0_4] : memref<32x1xf32, #tpu.memory_space<vmem>>, vector<32x1xf32>
    %5 = vector.broadcast %4 : vector<32x1xf32> to vector<32x16xf32>
    %6 = arith.addf %3, %5 : vector<32x16xf32>
    %7 = math.tanh %6 : vector<32x16xf32>
    %c0_5 = arith.constant 0 : index
    %c0_6 = arith.constant 0 : index
    %8 = vector.load %arg4[%c0_5, %c0_6] : memref<32x32xbf16, #tpu.memory_space<vmem>>, vector<32x32xbf16>
    %9 = arith.truncf %7 : vector<32x16xf32> to vector<32x16xbf16>
    %cst_7 = arith.constant dense<0.000000e+00> : vector<32x16xf32>
    %10 = tpu.matmul %8, %9, %cst_7 {dimension_numbers = #tpu.dot_dimension_numbers<[1], [0], [0], [1], [0, 0, 1, 1], [], []>} : vector<32x32xbf16>, vector<32x16xbf16>, vector<32x16xf32> -> vector<32x16xf32>
    %c0_8 = arith.constant 0 : index
    %c0_9 = arith.constant 0 : index
    %11 = vector.load %arg5[%c0_8, %c0_9] : memref<32x1xf32, #tpu.memory_space<vmem>>, vector<32x1xf32>
    %12 = vector.broadcast %11 : vector<32x1xf32> to vector<32x16xf32>
    %13 = arith.addf %10, %12 : vector<32x16xf32>
    %14 = math.tanh %13 : vector<32x16xf32>
    %c0_10 = arith.constant 0 : index
    %c0_11 = arith.constant 0 : index
    %15 = vector.load %arg6[%c0_10, %c0_11] : memref<32x1xf32, #tpu.memory_space<vmem>>, vector<32x1xf32>
    %16 = vector.broadcast %15 : vector<32x1xf32> to vector<32x16xf32>
    %17 = arith.mulf %14, %16 : vector<32x16xf32>
    %cst_12 = arith.constant dense<0.000000e+00> : vector<16xf32>
    %18 = vector.multi_reduction <add>, %17, %cst_12 [0] : vector<32x16xf32> to vector<16xf32>
    %19 = vector.shape_cast %18 : vector<16xf32> to vector<1x16xf32>
    %c0_13 = arith.constant 0 : index
    %c0_14 = arith.constant 0 : index
    %20 = vector.load %arg7[%c0_13, %c0_14] : memref<1x1xf32, #tpu.memory_space<vmem>>, vector<1x1xf32>
    %21 = vector.broadcast %20 : vector<1x1xf32> to vector<1x16xf32>
    %22 = arith.addf %19, %21 : vector<1x16xf32>
    %cst_15 = arith.constant 2.000000e+01 : f32
    %23 = vector.broadcast %cst_15 : f32 to vector<1x16xf32>
    %24 = arith.cmpf ogt, %22, %23 : vector<1x16xf32>
    %cst_16 = arith.constant 2.000000e+01 : f32
    %25 = vector.broadcast %cst_16 : f32 to vector<1x16xf32>
    %26 = arith.minimumf %22, %25 : vector<1x16xf32>
    %27 = math.exp %26 : vector<1x16xf32>
    %28 = math.log1p %27 : vector<1x16xf32>
    %29 = arith.select %24, %22, %28 : vector<1x16xi1>, vector<1x16xf32>
    %c0_17 = arith.constant 0 : index
    %c0_18 = arith.constant 0 : index
    %30 = vector.load %arg8[%c0_17, %c0_18] : memref<1x16xf32, #tpu.memory_space<vmem>>, vector<1x16xf32>
    tpu.vector_store %arg8[%c0_17, %c0_18], %29 {strides = array<i32>} : memref<1x16xf32, #tpu.memory_space<vmem>>, vector<1x16xf32>,
    return
  }
  func.func @transform_0(%arg0: i32) -> (i32, i32) {
    %c0_i32 = arith.constant 0 : i32
    %c0_i32_0 = arith.constant 0 : i32
    return %arg0, %c0_i32 : i32, i32
  }
  func.func @transform_1(%arg0: i32) -> (i32, i32) {
    %c0_i32 = arith.constant 0 : i32
    %c0_i32_0 = arith.constant 0 : i32
    %c0_i32_1 = arith.constant 0 : i32
    return %c0_i32, %c0_i32_0 : i32, i32
  }
  func.func @transform_2(%arg0: i32) -> (i32, i32) {
    %c0_i32 = arith.constant 0 : i32
    %c0_i32_0 = arith.constant 0 : i32
    %c0_i32_1 = arith.constant 0 : i32
    return %c0_i32, %c0_i32_0 : i32, i32
  }
  func.func @transform_3(%arg0: i32) -> (i32, i32) {
    %c0_i32 = arith.constant 0 : i32
    %c0_i32_0 = arith.constant 0 : i32
    %c0_i32_1 = arith.constant 0 : i32
    return %c0_i32, %c0_i32_0 : i32, i32
  }
  func.func @transform_4(%arg0: i32) -> (i32, i32) {
    %c0_i32 = arith.constant 0 : i32
    %c0_i32_0 = arith.constant 0 : i32
    %c0_i32_1 = arith.constant 0 : i32
    return %c0_i32, %c0_i32_0 : i32, i32
  }
  func.func @transform_5(%arg0: i32) -> (i32, i32) {
    %c0_i32 = arith.constant 0 : i32
    %c0_i32_0 = arith.constant 0 : i32
    %c0_i32_1 = arith.constant 0 : i32
    return %c0_i32, %c0_i32_0 : i32, i32
  }
  func.func @transform_6(%arg0: i32) -> (i32, i32) {
    %c0_i32 = arith.constant 0 : i32
    %c0_i32_0 = arith.constant 0 : i32
    %c0_i32_1 = arith.constant 0 : i32
    return %c0_i32, %c0_i32_0 : i32, i32
  }
  func.func @transform_7(%arg0: i32) -> (i32, i32) {
    %c0_i32 = arith.constant 0 : i32
    %c0_i32_0 = arith.constant 0 : i32
    return %arg0, %c0_i32 : i32, i32
  }
}

</mosaic_0001>

<llo_original>
// kernel: tpu_custom_call.1
$region0: #{tpu_custom_call.1}
  #allocation0 [shape = 'u32[]', space=smem, size = 0x4, offset = 0x4, fixed_abs, tag = 'smem constant byte address 0x4 - core index']
  #allocation1 [shape = 'u32[144,128]{1,0:T(1,128)}', space=vmem, size = 0x12000, scoped, tag = 'internal scratch']
  #allocation2 [shape = 'f32[1,1]{1,0:T(1,128)S(1)}', space=vmem, size = 0x200, scoped, tag = 'scoped memory for tpu_custom_call.1']
  %s0 = inlined_call_operand.vmem [shape: f32[16,32], index: 0, kind: input, shape index: {}]
  %s1 = inlined_call_operand.vmem [shape: bf16[32,32], index: 1, kind: input, shape index: {}]
  %s2 = inlined_call_operand.vmem [shape: f32[32,1], index: 2, kind: input, shape index: {}]
  %s3 = inlined_call_operand.vmem [shape: bf16[32,32], index: 3, kind: input, shape index: {}]
  %s4 = inlined_call_operand.vmem [shape: f32[32,1], index: 4, kind: input, shape index: {}]
  %s5 = inlined_call_operand.vmem [shape: f32[32,1], index: 5, kind: input, shape index: {}]
  %s6 = inlined_call_operand.<no memory space> [shape: f32[1,1], index: 6, kind: input, shape index: {}]
  %s7 = inlined_call_operand.hbm [shape: f32[1,16], index: 7, kind: output, shape index: {}]
  %s8 = sld [smem:[#allocation0]]
  $region38: #{tpu_custom_call.1} parent=0
    _
  %s10 = ssub.s32 1, %s8
  %s11 = scalar_select 0, %s10, %s8
  %v12 = vstv %s6
  %13 = vst [vmem:[#allocation2] sm:$0x1] %v12
  $region1: #{tpu_custom_call.1} parent=0
    #allocation3 [shape = 'u8[512]{0}', space=vmem, size = 0x400, scoped, tag = 'output window, operand 0, single buffered']
    #allocation4 [shape = 's32[1]{0}', space=sflag, size = 0x4, scoped, tag = 'scoped memory for tpu_custom_call.1']
    %14 = vsyncpa [#allocation4], 0
    // Predicated region
    $region2: #{tpu_custom_call.1} parent=1 // pred_check
      _
    $region3: #{tpu_custom_call.1} parent=1 // pred_check_branch
      %16 = sbr.rel (0) target = $region5
    $region4: #{tpu_custom_call.1} parent=1 // pred_region
      _
    $region5: #{tpu_custom_call.1} parent=1 // pred_fallthru
      _
    // Predicated region
    $region6: #{tpu_custom_call.1} parent=1 // pred_check
      _
    $region7: #{tpu_custom_call.1} parent=1 // pred_check_branch
      %18 = sbr.rel (0) target = $region9
    $region8: #{tpu_custom_call.1} parent=1 // pred_region
      _
    $region9: #{tpu_custom_call.1} parent=1 // pred_fallthru
      _
    // Predicated region
    $region10: #{tpu_custom_call.1} parent=1 // pred_check
      _
    $region11: #{tpu_custom_call.1} parent=1 // pred_check_branch
      %20 = sbr.rel (0) target = $region13
    $region12: #{tpu_custom_call.1} parent=1 // pred_region
      _
    $region13: #{tpu_custom_call.1} parent=1 // pred_fallthru
      _
    // Predicated region
    $region14: #{tpu_custom_call.1} parent=1 // pred_check
      _
    $region15: #{tpu_custom_call.1} parent=1 // pred_check_branch
      %22 = sbr.rel (0) target = $region17
    $region16: #{tpu_custom_call.1} parent=1 // pred_region
      _
    $region17: #{tpu_custom_call.1} parent=1 // pred_fallthru
      _
    // Predicated region
    $region18: #{tpu_custom_call.1} parent=1 // pred_check
      _
    $region19: #{tpu_custom_call.1} parent=1 // pred_check_branch
      %24 = sbr.rel (0) target = $region21
    $region20: #{tpu_custom_call.1} parent=1 // pred_region
      _
    $region21: #{tpu_custom_call.1} parent=1 // pred_fallthru
      _
    // Predicated region
    $region22: #{tpu_custom_call.1} parent=1 // pred_check
      _
    $region23: #{tpu_custom_call.1} parent=1 // pred_check_branch
      %26 = sbr.rel (0) target = $region25
    $region24: #{tpu_custom_call.1} parent=1 // pred_region
      _
    $region25: #{tpu_custom_call.1} parent=1 // pred_fallthru
      _
    // Predicated region
    $region26: #{tpu_custom_call.1} parent=1 // pred_check
      _
    $region27: #{tpu_custom_call.1} parent=1 // pred_check_branch
      %28 = sbr.rel (0) target = $region29
    $region28: #{tpu_custom_call.1} parent=1 // pred_region
      _
    $region29: #{tpu_custom_call.1} parent=1 // pred_fallthru
      _
    %v30 = vld [vmem:[%s0] sm:$0xff]
    %v31 = vld [vmem:[%s0 + $0x8] sm:$0xff]
    %v32 = vpack.c.bf16 %v31, %v30
    %v33 = vld [vmem:[%s1] sm:$0xf]
    %v34 = vld [vmem:[%s1 + $0x4] sm:$0xf]
    %v35 = vld [vmem:[%s1 + $0x8] sm:$0xf]
    %v36 = vld [vmem:[%s1 + $0xc] sm:$0xf]
    %v37 = vld [vmem:[%s2] sm:$0xff]
    %v38 = vld [vmem:[%s2 + $0x8] sm:$0xff]
    %v39 = vld [vmem:[%s2 + $0x10] sm:$0xff]
    %v40 = vld [vmem:[%s2 + $0x18] sm:$0xff]
    %42 = vset.pattern.permute.xlu0 0
    %43 = vperm.xlu0 %42, %v37
    %v44 = vpop.permute.xlu0 %43
    %47 = vset.pattern.permute.xlu0 0
    %48 = vperm.xlu0 %47, %v38
    %v49 = vpop.permute.xlu0 %48
    %52 = vset.pattern.permute.xlu0 0
    %53 = vperm.xlu0 %52, %v39
    %v54 = vpop.permute.xlu0 %53
    %57 = vset.pattern.permute.xlu0 0
    %58 = vperm.xlu0 %57, %v40
    %v59 = vpop.permute.xlu0 %58
    %v65 = vunpack.c.l.b16 %v33
    %v66 = vunpack.c.l.b16 %v34
    %v67 = vunpack.c.l.b16 %v35
    %v68 = vunpack.c.l.b16 %v36
    %v69 = vpack.c.b16 %v66, %v65
    %v70 = vpack.c.b16 %v68, %v67
    %vm71 = vcmask 261120
    %v73 = vsel %vm71, %v69, 0
    %v76 = vsel %vm71, %v70, 0
    %v79 = vsel %vm71, %v32, 0
    %81 = vmatprep.subr.bf16.mxu0 0
    %82 = vmatpush1.bf16.xpose.msra.mxu0 %v79
    %83 = vmatprep.subr.bf16.mxu0 0
    %84 = vmatpush1.bf16.xpose.msra.mxu0 0
    %85 = vmatprep.subr.bf16.mxu0 0
    %86 = vmatpush1.bf16.xpose.msra.mxu0 0
    %87 = vmatprep.subr.bf16.mxu0 0
    %88 = vmatpush1.bf16.xpose.msra.mxu0 0
    %89 = vmatprep.subr.bf16.mxu0 0
    %90 = vmatpush1.bf16.xpose.msra.mxu0 0
    %91 = vmatprep.subr.bf16.mxu0 0
    %92 = vmatpush1.bf16.xpose.msra.mxu0 0
    %93 = vmatprep.subr.bf16.mxu0 0
    %94 = vmatpush1.bf16.xpose.msra.mxu0 0
    %95 = vmatprep.subr.bf16.mxu0 0
    %96 = vmatpush1.bf16.xpose.msra.mxu0 0
    %97 = vmatprep.subr.bf16.mxu0 0
    %98 = vmatpush1.bf16.xpose.msra.mxu0 0
    %99 = vmatprep.subr.bf16.mxu0 0
    %100 = vmatpush1.bf16.xpose.msra.mxu0 0
    %101 = vmatprep.subr.bf16.mxu0 0
    %102 = vmatpush1.bf16.xpose.msra.mxu0 0
    %103 = vmatprep.subr.bf16.mxu0 0
    %104 = vmatpush1.bf16.xpose.msra.mxu0 0
    %105 = vmatprep.subr.bf16.mxu0 0
    %106 = vmatpush1.bf16.xpose.msra.mxu0 0
    %107 = vmatprep.subr.bf16.mxu0 0
    %108 = vmatpush1.bf16.xpose.msra.mxu0 0
    %109 = vmatprep.subr.bf16.mxu0 0
    %110 = vmatpush1.bf16.xpose.msra.mxu0 0
    %111 = vmatprep.subr.bf16.mxu0 0
    %112 = vmatpush1.bf16.xpose.msra.mxu0 0
    %113 = vmatprep.mubr.bf16.mxu0 0
    %114 = vmatmul.mubr.bf16.gmra.mrb[0].mxu0 %v73
    %v115 = vpop.f32.mrb[0].mxu0
    %v116 = vadd.f32 %v44, %v115
    %v117 = vpop.f32.mrb[0].mxu0
    %v118 = vpop.f32.mrb[0].mxu0
    %v119 = vadd.f32 %v49, %v118
    %v120 = vpop.f32.mrb[0].mxu0
    %121 = vmatprep.mubr.bf16.mxu0 0
    %122 = vmatmul.mubr.bf16.gmra.mrb[0].mxu0 %v76
    %v123 = vpop.f32.mrb[0].mxu0
    %v124 = vadd.f32 %v54, %v123
    %v125 = vpop.f32.mrb[0].mxu0
    %v126 = vpop.f32.mrb[0].mxu0
    %v127 = vadd.f32 %v59, %v126
    %v128 = vpop.f32.mrb[0].mxu0
    %129 = vdwg.mxu0
    %v130 = vtanh.pop %v116
    %v131 = vtanh.pop %v119
    %v132 = vtanh.pop %v124
    %v133 = vtanh.pop %v127
    %v134 = vld [vmem:[%s3] sm:$0xf]
    %v135 = vld [vmem:[%s3 + $0x4] sm:$0xf]
    %v136 = vld [vmem:[%s3 + $0x8] sm:$0xf]
    %v137 = vld [vmem:[%s3 + $0xc] sm:$0xf]
    %v138 = vpack.c.bf16 %v131, %v130
    %v139 = vpack.c.bf16 %v133, %v132
    %v140 = vld [vmem:[%s4] sm:$0xff]
    %v141 = vld [vmem:[%s4 + $0x8] sm:$0xff]
    %v142 = vld [vmem:[%s4 + $0x10] sm:$0xff]
    %v143 = vld [vmem:[%s4 + $0x18] sm:$0xff]
    %145 = vset.pattern.permute.xlu0 0
    %146 = vperm.xlu0 %145, %v140
    %v147 = vpop.permute.xlu0 %146
    %150 = vset.pattern.permute.xlu0 0
    %151 = vperm.xlu0 %150, %v141
    %v152 = vpop.permute.xlu0 %151
    %155 = vset.pattern.permute.xlu0 0
    %156 = vperm.xlu0 %155, %v142
    %v157 = vpop.permute.xlu0 %156
    %160 = vset.pattern.permute.xlu0 0
    %161 = vperm.xlu0 %160, %v143
    %v162 = vpop.permute.xlu0 %161
    %v168 = vunpack.c.l.b16 %v134
    %v169 = vunpack.c.l.b16 %v135
    %v170 = vunpack.c.l.b16 %v136
    %v171 = vunpack.c.l.b16 %v137
    %v172 = vpack.c.b16 %v169, %v168
    %v173 = vpack.c.b16 %v171, %v170
    %v175 = vsel %vm71, %v172, 0
    %v178 = vsel %vm71, %v173, 0
    %180 = vmatprep.subr.bf16.mxu0 0
    %181 = vmatpush1.bf16.msra.mxu0 %v138
    %182 = vmatprep.subr.bf16.mxu0 0
    %183 = vmatpush1.bf16.msra.mxu0 %v139
    %184 = vmatprep.subr.bf16.mxu0 0
    %185 = vmatpush1.bf16.msra.mxu0 0
    %186 = vmatprep.subr.bf16.mxu0 0
    %187 = vmatpush1.bf16.msra.mxu0 0
    %188 = vmatprep.subr.bf16.mxu0 0
    %189 = vmatpush1.bf16.msra.mxu0 0
    %190 = vmatprep.subr.bf16.mxu0 0
    %191 = vmatpush1.bf16.msra.mxu0 0
    %192 = vmatprep.subr.bf16.mxu0 0
    %193 = vmatpush1.bf16.msra.mxu0 0
    %194 = vmatprep.subr.bf16.mxu0 0
    %195 = vmatpush1.bf16.msra.mxu0 0
    %196 = vmatprep.subr.bf16.mxu0 0
    %197 = vmatpush1.bf16.msra.mxu0 0
    %198 = vmatprep.subr.bf16.mxu0 0
    %199 = vmatpush1.bf16.msra.mxu0 0
    %200 = vmatprep.subr.bf16.mxu0 0
    %201 = vmatpush1.bf16.msra.mxu0 0
    %202 = vmatprep.subr.bf16.mxu0 0
    %203 = vmatpush1.bf16.msra.mxu0 0
    %204 = vmatprep.subr.bf16.mxu0 0
    %205 = vmatpush1.bf16.msra.mxu0 0
    %206 = vmatprep.subr.bf16.mxu0 0
    %207 = vmatpush1.bf16.msra.mxu0 0
    %208 = vmatprep.subr.bf16.mxu0 0
    %209 = vmatpush1.bf16.msra.mxu0 0
    %210 = vmatprep.subr.bf16.mxu0 0
    %211 = vmatpush1.bf16.msra.mxu0 0
    %212 = vmatprep.mubr.bf16.mxu0 0
    %213 = vmatmul.mubr.bf16.gmra.mrb[0].mxu0 %v175
    %v214 = vpop.f32.mrb[0].mxu0
    %v215 = vadd.f32 %v147, %v214
    %v216 = vpop.f32.mrb[0].mxu0
    %v217 = vpop.f32.mrb[0].mxu0
    %v218 = vadd.f32 %v152, %v217
    %v219 = vpop.f32.mrb[0].mxu0
    %220 = vmatprep.mubr.bf16.mxu0 0
    %221 = vmatmul.mubr.bf16.gmra.mrb[0].mxu0 %v178
    %v222 = vpop.f32.mrb[0].mxu0
    %v223 = vadd.f32 %v157, %v222
    %v224 = vpop.f32.mrb[0].mxu0
    %v225 = vpop.f32.mrb[0].mxu0
    %v226 = vadd.f32 %v162, %v225
    %v227 = vpop.f32.mrb[0].mxu0
    %228 = vdwg.mxu0
    %v229 = vtanh.pop %v215
    %v230 = vtanh.pop %v218
    %v231 = vtanh.pop %v223
    %v232 = vtanh.pop %v226
    %v233 = vld [vmem:[%s5] sm:$0xff]
    %v234 = vld [vmem:[%s5 + $0x8] sm:$0xff]
    %v235 = vld [vmem:[%s5 + $0x10] sm:$0xff]
    %v236 = vld [vmem:[%s5 + $0x18] sm:$0xff]
    %238 = vset.pattern.permute.xlu0 0
    %239 = vperm.xlu0 %238, %v233
    %v240 = vpop.permute.xlu0 %239
    %243 = vset.pattern.permute.xlu0 0
    %244 = vperm.xlu0 %243, %v234
    %v245 = vpop.permute.xlu0 %244
    %248 = vset.pattern.permute.xlu0 0
    %249 = vperm.xlu0 %248, %v235
    %v250 = vpop.permute.xlu0 %249
    %253 = vset.pattern.permute.xlu0 0
    %254 = vperm.xlu0 %253, %v236
    %v255 = vpop.permute.xlu0 %254
    %v257 = vmul.f32 %v229, %v240
    %v258 = vmul.f32 %v230, %v245
    %v259 = vmul.f32 %v231, %v250
    %v260 = vmul.f32 %v232, %v255
    %vm261 = vcmask 130048
    %v262 = vsel %vm261, %v257, 0.0
    %v263 = vsel %vm261, %v258, 0.0
    %v264 = vadd.f32 %v262, %v263
    %v265 = vsel %vm261, %v259, 0.0
    %v266 = vadd.f32 %v264, %v265
    %v267 = vsel %vm261, %v260, 0.0
    %v268 = vadd.f32 %v266, %v267
    %v269 = vrot.slane %v268, 4
    %v270 = vadd.f32 %v268, %v269
    %v271 = vrot.slane %v270, 2
    %v272 = vadd.f32 %v270, %v271
    %v273 = vrot.slane %v272, 1
    %v274 = vadd.f32 %v272, %v273
    %v275 = vld [vmem:[#allocation2] sm:$0x1]
    %277 = vset.pattern.permute.xlu0 0
    %278 = vperm.xlu0 %277, %v275
    %v279 = vpop.permute.xlu0 %278
    %v281 = vlaneseq
    %v282 = vshrl.u32 %v281, 7
    %v283 = vsub.s32 0, %v282
    %v284 = vrot.slane %v279, %v283
    %v285 = vadd.f32 %v274, %v284
    %vm286 = vcmp.gt.f32.partialorder %v285, 20.0
    %v287 = vmin.f32 %v285, 20.0
    %v288 = vmul.f32 %v287, 1.442695
    %v289 = vpow.pop %v288
    %v290 = vadd.f32 %v289, 1.0
    %v291 = vlog2.pop %v290
    %v292 = vmul.f32 %v291, 0.6931472
    %v293 = vmul.f32 -0.5, %v289
    %v294 = vadd.f32 %v293, 1.0
    %v295 = vmul.f32 %v294, %v289
    %v296 = vand.u32 2147483647, %v289
    %vm297 = vcmp.lt.f32.partialorder %v296, 0.0004427343
    %v298 = vsel %vm297, %v295, %v292
    %v299 = vsel %vm286, %v285, %v298
    %vm300 = vcmask 122880
    %301 = vst.msk [vmem:[#allocation3] sm:$0x1] %vm300, %v299
    // Predicated region
    $region30: #{tpu_custom_call.1} parent=1 // pred_check
      _
    $region31: #{tpu_custom_call.1} parent=1 // pred_check_branch
      %303 = sbr.rel (0) target = $region33
    $region32: #{tpu_custom_call.1} parent=1 // pred_region
      %s305 = ssub.s32 16, 16
      %306 = vsyncadd [#allocation4], %s305
      %s308 = sshll.u32 [#allocation3], 4
      %s309 = int_to_ptr.vmem [resolvable:$true] %s308
      %311 = dma.vmem_to_hbm [thread:$0]  %s309, 16, %s7, [#allocation4]
    $region33: #{tpu_custom_call.1} parent=1 // pred_fallthru
      _
    // Predicated region
    $region34: #{tpu_custom_call.1} parent=1 // pred_check
      _
    $region35: #{tpu_custom_call.1} parent=1 // pred_check_branch
      %313 = sbr.rel (0) target = $region37
    $region36: #{tpu_custom_call.1} parent=1 // pred_region
      %314 = dma.done [#allocation4], 16
    $region37: #{tpu_custom_call.1} parent=1 // pred_fallthru
      _
    %315 = vsyncpa [#allocation4], 1

</llo_original>
